<compile_context>
chip_gen: v5e
topology: v5e:2x2
jax: 0.10.0
libtpu: 0.0.40
codegen_flags: <defaults>
</compile_context>

<pallas_src>
import functools

import jax
import jax.numpy as jnp
from jax import lax
from jax.experimental import pallas as pl
from jax.experimental.pallas import tpu as pltpu

BN_EPS = 1e-5


# ---------------------------------------------------------------------------
# Kernel
# ---------------------------------------------------------------------------
def _rrnet_kernel(x_ref, w_ref, b_ref, ones_ref, o_ref, *, depth,
                  sum_via_matmul):
    """One batch tile of the (lane-packed) RRNet forward pass.

    x_ref    : (BN, PD)            packed input tile (f32), PD = pack*dim
    w_ref    : (depth+1, PD, PD)   BN-folded, block-diagonal weights (in,out)
    b_ref    : (depth+1, 1, PD)    BN-folded, lane-tiled biases (f32)
    ones_ref : (PD, PD)            block-diag ones (f32) for the row-sum matmul
    o_ref    : (BN, PD)            packed output tile
    """
    mm_dtype = w_ref.dtype  # f32, or bf16 if the wrapper cast the weights
    # Note: x's f32 value is NOT kept live across the depth loop; it is
    # re-read from VMEM at the skip connection (bounds vreg pressure).
    h = x_ref[...].astype(mm_dtype)
    for i in range(depth):
        # Linear (MXU) + bias; BatchNorm(eval) pre-folded, Dropout(eval)=id.
        h = jnp.dot(h, w_ref[i], preferred_element_type=jnp.float32) + b_ref[i]
        h = jnp.maximum(h, 0.0).astype(mm_dtype)  # ReLU (VPU), cast for MXU
    # Final Linear
    h = jnp.dot(h, w_ref[depth], preferred_element_type=jnp.float32) + b_ref[depth]
    # Skip connection (re-read x from VMEM)
    y = x_ref[...].astype(jnp.float32) + h
    # Row-sum normalization: y / y.sum(axis=1, keepdims=True) per LOGICAL row.
    # With lane packing the per-block sum is computed by one more MXU matmul
    # against a block-diagonal ones matrix (broadcasts the sum across lanes).
    # NOTE: matches torch semantics; a (near-)zero row sum yields Inf/NaN.
    if sum_via_matmul:
        s = jnp.dot(y, ones_ref[...], preferred_element_type=jnp.float32)
    else:
        s = jnp.sum(y, axis=1, keepdims=True)
    inv = pl.reciprocal(s, approx=True)   # EUP vrcp (otherwise-idle slot)
    inv = inv * (2.0 - s * inv)           # one Newton step -> ~f32 accuracy
    o_ref[...] = (y * inv).astype(o_ref.dtype)


# ---------------------------------------------------------------------------
# Wrapper helpers
# ---------------------------------------------------------------------------
def _round_up(v, m):
    return (v + m - 1) // m * m


def _pack_factor(n, dim):
    """How many logical rows to pack per physical lane-row (power of 2)."""
    if dim >= 128 or 128 % dim != 0:
        return 1
    p = 128 // dim
    while p > 1 and n % p != 0:
        p //= 2
    return p


def _pick_block_n(n, row_bytes, target_tile_bytes=4 << 20):
    """Largest multiple-of-8 divisor of n, <= min(VMEM-derived cap, n//2).

    Guarantees >= 2 grid programs when n allows it (v7x has 2 TensorCores and a
    grid of (1,) disables pipelining).  Tile size targets ~4 MiB so per-step
    overhead is amortized (measured 29% -> ~86% of HBM roofline going from
    128-row to 1024+-row tiles).
    """
    if n < 16 or n % 8 != 0:
        return n
    cap_rows = max(8, target_tile_bytes // max(row_bytes, 1))
    cap_rows = (cap_rows // 8) * 8
    upper = min(cap_rows, n // 2)
    best = None
    cand = 8
    while cand <= upper:
        if n % cand == 0:
            best = cand
        cand += 8
    return best if best is not None else n


def _vmem_cap_bytes():
    """Generation-aware VMEM cap: physical VMEM minus ~8 MiB headroom.

    v7x: 64 MiB physical -> 56 MiB cap.  v5e/v6e: 128 MiB -> 100 MiB cap.
    Falls back to the v7x-safe 56 MiB when the query is unavailable.
    """
    try:
        info = pltpu.get_tpu_info()
        phys = int(getattr(info, "vmem_capacity_bytes", 64 << 20))
    except Exception:
        phys = 64 << 20
    return max(min(phys - (8 << 20), 100 << 20), 16 << 20)


def _vmem_limit_bytes(depth, pd, block_n, matmul_dtype, *, ones_used):
    """Layout-padded VMEM estimate, clamped to the generation-aware cap."""
    itemsize = jnp.dtype(matmul_dtype).itemsize
    sub_w = 8 * (4 // itemsize)           # f32 -> 8 rows / sublane tile, bf16 -> 16
    pd_l = _round_up(pd, 128)
    w_bytes = (depth + 1) * _round_up(pd, sub_w) * pd_l * itemsize  # single-buffered
    b_bytes = (depth + 1) * 8 * pd_l * 4
    ones_bytes = (_round_up(pd, 8) * pd_l * 4) if ones_used else (8 * 128 * 4)
    io_bytes = 2 * 2 * _round_up(block_n, 8) * pd_l * 4  # double-buffered x & out
    est = int(1.25 * (w_bytes + b_bytes + ones_bytes + io_bytes)) + (4 << 20)
    return min(max(est, 32 << 20), _vmem_cap_bytes())


def _invariant_spec(arr, single_buffer):
    """Full-array BlockSpec for a grid-invariant parameter."""
    zeros = (0,) * arr.ndim
    index_map = lambda i, _z=zeros: _z
    if single_buffer:
        # Grid-invariant: a single buffer halves resident param VMEM.
        return pl.BlockSpec(arr.shape, index_map, pipeline_mode=pl.Buffered(1))
    return pl.BlockSpec(arr.shape, index_map)


def fold_batchnorm(params, *, depth, eps=BN_EPS):
    """Fold eval-mode BatchNorm into the *following* Linear layer (f32).

    After ReLU, BN does  h' = h * scale + shift  with
        scale = gamma * rsqrt(var + eps),  shift = beta - mean * scale.
    Then  h' @ W + b  ==  h @ (scale[:, None] * W) + (shift @ W + b).
    """
    w = params["w"].astype(jnp.float32)      # (depth+1, dim, dim), (in, out)
    b = params["b"].astype(jnp.float32)      # (depth+1, 1, dim)
    scale = params["gamma"] * lax.rsqrt(params["var"] + eps)  # (depth, 1, dim)
    shift = params["beta"] - params["mean"] * scale           # (depth, 1, dim)
    w_list = [w[0]]
    b_list = [b[0]]
    for i in range(1, depth + 1):
        s = scale[i - 1][0]                  # (dim,)
        sh = shift[i - 1]                    # (1, dim)
        w_list.append(s[:, None] * w[i])     # scale the *input* rows of W_i
        b_list.append(b[i] + sh @ w[i])
    return jnp.stack(w_list), jnp.stack(b_list)


def pack_params(w_f, b_f, *, pack, matmul_dtype):
    """Expand folded params to the lane-packed block-diagonal layout."""
    if pack > 1:
        eye = jnp.eye(pack, dtype=jnp.float32)
        w_blk = jax.vmap(lambda w: jnp.kron(eye, w))(w_f)   # (L, PD, PD)
        b_blk = jnp.tile(b_f, (1, 1, pack))                 # (L, 1, PD)
    else:
        w_blk, b_blk = w_f, b_f
    return w_blk.astype(matmul_dtype), b_blk  # bias / elementwise stay f32


# ---------------------------------------------------------------------------
# Forward
# ---------------------------------------------------------------------------
def rrnet_forward(x, params, *, depth, block_n=None, matmul_dtype=jnp.float32):
    """Run RRNet forward on TPU via a Pallas kernel.

    x: (N, dim) float32.
    params: dict with w (depth+1, dim, dim) [in,out layout], b (depth+1,1,dim),
            gamma/beta/mean/var (depth, 1, dim)  (eval-mode BN running stats).
    matmul_dtype: jnp.bfloat16 uses the fast v6e/v7x MXU path and halves weight
            DMA bytes; accumulation and all elementwise math stay f32.
    """
    n, dim = x.shape
    pack = _pack_factor(n, dim)
    pd = pack * dim

    w_f, b_f = fold_batchnorm(params, depth=depth)
    w_blk, b_blk = pack_params(w_f, b_f, pack=pack, matmul_dtype=matmul_dtype)

    sum_via_matmul = (pack > 1) or (pd <= 512)
    if sum_via_matmul:
        ones_blk = jnp.kron(jnp.eye(pack, dtype=jnp.float32),
                            jnp.ones((dim, dim), jnp.float32))
    else:
        ones_blk = jnp.zeros((8, 128), jnp.float32)  # unused placeholder

    # Pack `pack` consecutive logical rows into one lane-dense physical row.
    x_p = x.reshape(n // pack, pd)
    n_packed = x_p.shape[0]

    if block_n is None:
        block_n = _pick_block_n(n_packed, pd * 4)
    assert n_packed % block_n == 0, "block_n must divide the packed batch"
    assert block_n == n_packed or block_n % 8 == 0, \
        "block_n must be a multiple of 8 (sublane) unless it equals N_packed"
    grid = (n_packed // block_n,)

    vmem_limit = _vmem_limit_bytes(depth, pd, block_n, matmul_dtype,
                                   ones_used=sum_via_matmul)

    kernel = functools.partial(_rrnet_kernel, depth=depth,
                               sum_via_matmul=sum_via_matmul)
    out_shape = jax.ShapeDtypeStruct((n_packed, pd), x.dtype)
    x_spec = pl.BlockSpec((block_n, pd), lambda i: (i, 0))
    o_spec = pl.BlockSpec((block_n, pd), lambda i: (i, 0))

    cost = pl.CostEstimate(
        flops=2 * (depth + 2) * n * dim * dim,
        transcendentals=n * dim,
        bytes_accessed=int(2 * x.nbytes + w_blk.nbytes + b_blk.nbytes
                           + ones_blk.nbytes))

    cparams = pltpu.CompilerParams(dimension_semantics=("parallel",),
                                   vmem_limit_bytes=vmem_limit)

    def build(single_buffer_params):
        return pl.pallas_call(
            kernel,
            out_shape=out_shape,
            grid=grid,
            in_specs=[x_spec,
                      _invariant_spec(w_blk, single_buffer_params),
                      _invariant_spec(b_blk, single_buffer_params),
                      _invariant_spec(ones_blk, single_buffer_params)],
            out_specs=o_spec,
            compiler_params=cparams,
            cost_estimate=cost,
        )

    try:
        out = build(True)(x_p, w_blk, b_blk, ones_blk)
    except Exception as e:
        # Only fall back when Buffered(1)/pipeline_mode itself is rejected;
        # genuine compile/runtime errors (e.g. VMEM OOM) must propagate.
        msg = str(e).lower()
        if ("buffered" not in msg) and ("pipeline_mode" not in msg):
            raise
        out = build(False)(x_p, w_blk, b_blk, ones_blk)
    return out.reshape(n, dim)


# ---------------------------------------------------------------------------
# Params + pure-JAX reference
# ---------------------------------------------------------------------------
def init_params(key, dim, depth):
    """Deterministic parameter init (shapes match the torch module)."""
    kw, kb, kg, kbt, km, kv = jax.random.split(key, 6)
    # torch Linear weight is (out, in); we store pre-transposed (in, out).
    w = jax.random.normal(kw, (depth + 1, dim, dim), jnp.float32) / jnp.sqrt(dim)
    b = 0.1 * jax.random.normal(kb, (depth + 1, 1, dim), jnp.float32)
    gamma = 1.0 + 0.1 * jax.random.normal(kg, (depth, 1, dim), jnp.float32)
    beta = 0.1 * jax.random.normal(kbt, (depth, 1, dim), jnp.float32)
    mean = 0.1 * jax.random.normal(km, (depth, 1, dim), jnp.float32)
    var = 1.0 + 0.1 * jax.random.uniform(kv, (depth, 1, dim), jnp.float32)
    return {"w": w, "b": b, "gamma": gamma, "beta": beta, "mean": mean, "var": var}


def rrnet_reference(x, params, *, depth):
    """Pure-JAX reference with *unfolded* BN (also validates folding+packing)."""
    h = x
    for i in range(depth):
        h = h @ params["w"][i] + params["b"][i]
        h = jnp.maximum(h, 0.0)
        h = (h - params["mean"][i]) * lax.rsqrt(params["var"][i] + BN_EPS) \
            * params["gamma"][i] + params["beta"][i]
    h = h @ params["w"][depth] + params["b"][depth]
    y = x + h
    return y / jnp.sum(y, axis=1, keepdims=True)


if __name__ == "__main__":
    DIM = 32
    DEPTH = 3
    N = 256          # pack=4 -> packed batch 64, block_n=32, grid=(2,)

    key = jax.random.PRNGKey(0)
    kx, kp = jax.random.split(key)
    # Positive inputs keep the row sums well away from zero, so the
    # (torch-matching) y / y.sum() normalization is well conditioned.
    x = jax.random.uniform(kx, (N, DIM), jnp.float32, minval=0.5, maxval=1.5)
    params = init_params(kp, DIM, DEPTH)

    ref = rrnet_reference(x, params, depth=DEPTH)

    # f32 matmul path: tight tolerance (validates BN folding + lane packing).
    out = rrnet_forward(x, params, depth=DEPTH, matmul_dtype=jnp.float32)
    out = jax.block_until_ready(out)
    assert out.shape == (N, DIM)
    assert bool(jnp.all(jnp.isfinite(out))), "non-finite output"
    assert jnp.allclose(out, ref, atol=1e-4, rtol=1e-4), "f32 mismatch vs reference"

    # bf16-weight fast MXU path (f32 accumulation/elementwise): looser tolerance
    # because per-layer bf16 activation casts accumulate error across depth.
    out_bf16 = rrnet_forward(x, params, depth=DEPTH, matmul_dtype=jnp.bfloat16)
    out_bf16 = jax.block_until_ready(out_bf16)
    assert bool(jnp.all(jnp.isfinite(out_bf16))), "non-finite bf16 output"
    assert jnp.allclose(out_bf16, ref, atol=2e-2, rtol=5e-2), \
        "bf16 mismatch vs reference"

    print("KERNEL_OK")
</pallas_src>

<mosaic_0001>
module attributes {stable_mosaic.version = 11 : i64} {
  func.func @_rrnet_kernel(%arg0: i32, %arg1: memref<32x128xf32, #tpu.memory_space<vmem>>, %arg2: memref<4x128x128xf32, #tpu.memory_space<vmem>>, %arg3: memref<4x1x128xf32, #tpu.memory_space<vmem>>, %arg4: memref<128x128xf32, #tpu.memory_space<vmem>>, %arg5: memref<32x128xf32, #tpu.memory_space<vmem>>) attributes {dimension_semantics = [#tpu.dimension_semantics<parallel>], iteration_bounds = array<i64: 2>, scalar_prefetch = 0 : i64, scratch_operands = 0 : i64, tpu.core_type = #tpu.core_type<tc>, window_params = [{transform_indices = @transform_0, window_bounds = array<i64: 32, 128>}, {pipeline_mode = #tpu.pipeline_mode<synchronous>, transform_indices = @transform_1, window_bounds = array<i64: 4, 128, 128>}, {pipeline_mode = #tpu.pipeline_mode<synchronous>, transform_indices = @transform_2, window_bounds = array<i64: 4, 1, 128>}, {pipeline_mode = #tpu.pipeline_mode<synchronous>, transform_indices = @transform_3, window_bounds = array<i64: 128, 128>}, {transform_indices = @transform_4, window_bounds = array<i64: 32, 128>}]} {
    %c0 = arith.constant 0 : index
    %c0_0 = arith.constant 0 : index
    %0 = vector.load %arg1[%c0, %c0_0] : memref<32x128xf32, #tpu.memory_space<vmem>>, vector<32x128xf32>
    %c0_1 = arith.constant 0 : index
    %c0_2 = arith.constant 0 : index
    %c0_3 = arith.constant 0 : index
    %1 = vector.load %arg2[%c0_1, %c0_2, %c0_3] : memref<4x128x128xf32, #tpu.memory_space<vmem>>, vector<1x128x128xf32>
    %2 = vector.shape_cast %1 : vector<1x128x128xf32> to vector<128x128xf32>
    %cst = arith.constant dense<0.000000e+00> : vector<32x128xf32>
    %3 = tpu.matmul %0, %2, %cst {dimension_numbers = #tpu.dot_dimension_numbers<[1], [0], [0], [1], [0, 0, 1, 1], [], []>} : vector<32x128xf32>, vector<128x128xf32>, vector<32x128xf32> -> vector<32x128xf32>
    %c0_4 = arith.constant 0 : index
    %c0_5 = arith.constant 0 : index
    %c0_6 = arith.constant 0 : index
    %4 = vector.load %arg3[%c0_4, %c0_5, %c0_6] : memref<4x1x128xf32, #tpu.memory_space<vmem>>, vector<1x1x128xf32>
    %5 = vector.shape_cast %4 : vector<1x1x128xf32> to vector<1x128xf32>
    %6 = vector.broadcast %5 : vector<1x128xf32> to vector<32x128xf32>
    %7 = arith.addf %3, %6 : vector<32x128xf32>
    %cst_7 = arith.constant 0.000000e+00 : f32
    %8 = vector.broadcast %cst_7 : f32 to vector<32x128xf32>
    %9 = arith.maximumf %7, %8 : vector<32x128xf32>
    %c1 = arith.constant 1 : index
    %c0_8 = arith.constant 0 : index
    %c0_9 = arith.constant 0 : index
    %10 = vector.load %arg2[%c1, %c0_8, %c0_9] : memref<4x128x128xf32, #tpu.memory_space<vmem>>, vector<1x128x128xf32>
    %11 = vector.shape_cast %10 : vector<1x128x128xf32> to vector<128x128xf32>
    %cst_10 = arith.constant dense<0.000000e+00> : vector<32x128xf32>
    %12 = tpu.matmul %9, %11, %cst_10 {dimension_numbers = #tpu.dot_dimension_numbers<[1], [0], [0], [1], [0, 0, 1, 1], [], []>} : vector<32x128xf32>, vector<128x128xf32>, vector<32x128xf32> -> vector<32x128xf32>
    %c1_11 = arith.constant 1 : index
    %c0_12 = arith.constant 0 : index
    %c0_13 = arith.constant 0 : index
    %13 = vector.load %arg3[%c1_11, %c0_12, %c0_13] : memref<4x1x128xf32, #tpu.memory_space<vmem>>, vector<1x1x128xf32>
    %14 = vector.shape_cast %13 : vector<1x1x128xf32> to vector<1x128xf32>
    %15 = vector.broadcast %14 : vector<1x128xf32> to vector<32x128xf32>
    %16 = arith.addf %12, %15 : vector<32x128xf32>
    %cst_14 = arith.constant 0.000000e+00 : f32
    %17 = vector.broadcast %cst_14 : f32 to vector<32x128xf32>
    %18 = arith.maximumf %16, %17 : vector<32x128xf32>
    %c2 = arith.constant 2 : index
    %c0_15 = arith.constant 0 : index
    %c0_16 = arith.constant 0 : index
    %19 = vector.load %arg2[%c2, %c0_15, %c0_16] : memref<4x128x128xf32, #tpu.memory_space<vmem>>, vector<1x128x128xf32>
    %20 = vector.shape_cast %19 : vector<1x128x128xf32> to vector<128x128xf32>
    %cst_17 = arith.constant dense<0.000000e+00> : vector<32x128xf32>
    %21 = tpu.matmul %18, %20, %cst_17 {dimension_numbers = #tpu.dot_dimension_numbers<[1], [0], [0], [1], [0, 0, 1, 1], [], []>} : vector<32x128xf32>, vector<128x128xf32>, vector<32x128xf32> -> vector<32x128xf32>
    %c2_18 = arith.constant 2 : index
    %c0_19 = arith.constant 0 : index
    %c0_20 = arith.constant 0 : index
    %22 = vector.load %arg3[%c2_18, %c0_19, %c0_20] : memref<4x1x128xf32, #tpu.memory_space<vmem>>, vector<1x1x128xf32>
    %23 = vector.shape_cast %22 : vector<1x1x128xf32> to vector<1x128xf32>
    %24 = vector.broadcast %23 : vector<1x128xf32> to vector<32x128xf32>
    %25 = arith.addf %21, %24 : vector<32x128xf32>
    %cst_21 = arith.constant 0.000000e+00 : f32
    %26 = vector.broadcast %cst_21 : f32 to vector<32x128xf32>
    %27 = arith.maximumf %25, %26 : vector<32x128xf32>
    %c3 = arith.constant 3 : index
    %c0_22 = arith.constant 0 : index
    %c0_23 = arith.constant 0 : index
    %28 = vector.load %arg2[%c3, %c0_22, %c0_23] : memref<4x128x128xf32, #tpu.memory_space<vmem>>, vector<1x128x128xf32>
    %29 = vector.shape_cast %28 : vector<1x128x128xf32> to vector<128x128xf32>
    %cst_24 = arith.constant dense<0.000000e+00> : vector<32x128xf32>
    %30 = tpu.matmul %27, %29, %cst_24 {dimension_numbers = #tpu.dot_dimension_numbers<[1], [0], [0], [1], [0, 0, 1, 1], [], []>} : vector<32x128xf32>, vector<128x128xf32>, vector<32x128xf32> -> vector<32x128xf32>
    %c3_25 = arith.constant 3 : index
    %c0_26 = arith.constant 0 : index
    %c0_27 = arith.constant 0 : index
    %31 = vector.load %arg3[%c3_25, %c0_26, %c0_27] : memref<4x1x128xf32, #tpu.memory_space<vmem>>, vector<1x1x128xf32>
    %32 = vector.shape_cast %31 : vector<1x1x128xf32> to vector<1x128xf32>
    %33 = vector.broadcast %32 : vector<1x128xf32> to vector<32x128xf32>
    %34 = arith.addf %30, %33 : vector<32x128xf32>
    %c0_28 = arith.constant 0 : index
    %c0_29 = arith.constant 0 : index
    %35 = vector.load %arg1[%c0_28, %c0_29] : memref<32x128xf32, #tpu.memory_space<vmem>>, vector<32x128xf32>
    %36 = arith.addf %35, %34 : vector<32x128xf32>
    %c0_30 = arith.constant 0 : index
    %c0_31 = arith.constant 0 : index
    %37 = vector.load %arg4[%c0_30, %c0_31] : memref<128x128xf32, #tpu.memory_space<vmem>>, vector<128x128xf32>
    %cst_32 = arith.constant dense<0.000000e+00> : vector<32x128xf32>
    %38 = tpu.matmul %36, %37, %cst_32 {dimension_numbers = #tpu.dot_dimension_numbers<[1], [0], [0], [1], [0, 0, 1, 1], [], []>} : vector<32x128xf32>, vector<128x128xf32>, vector<32x128xf32> -> vector<32x128xf32>
    %39 = tpu.reciprocal %38 {approx = true} : vector<32x128xf32> -> vector<32x128xf32>
    %40 = arith.mulf %38, %39 : vector<32x128xf32>
    %cst_33 = arith.constant 2.000000e+00 : f32
    %41 = vector.broadcast %cst_33 : f32 to vector<32x128xf32>
    %42 = arith.subf %41, %40 : vector<32x128xf32>
    %43 = arith.mulf %39, %42 : vector<32x128xf32>
    %44 = arith.mulf %36, %43 : vector<32x128xf32>
    %c0_34 = arith.constant 0 : index
    %c0_35 = arith.constant 0 : index
    %45 = vector.load %arg5[%c0_34, %c0_35] : memref<32x128xf32, #tpu.memory_space<vmem>>, vector<32x128xf32>
    tpu.vector_store %arg5[%c0_34, %c0_35], %44 {strides = array<i32>} : memref<32x128xf32, #tpu.memory_space<vmem>>, vector<32x128xf32>,
    return
  }
  func.func @transform_0(%arg0: i32) -> (i32, i32) {
    %c0_i32 = arith.constant 0 : i32
    %c0_i32_0 = arith.constant 0 : i32
    return %arg0, %c0_i32 : i32, i32
  }
  func.func @transform_1(%arg0: i32) -> (i32, i32, i32) {
    %c0_i32 = arith.constant 0 : i32
    %c0_i32_0 = arith.constant 0 : i32
    %c0_i32_1 = arith.constant 0 : i32
    %c0_i32_2 = arith.constant 0 : i32
    return %c0_i32, %c0_i32_0, %c0_i32_1 : i32, i32, i32
  }
  func.func @transform_2(%arg0: i32) -> (i32, i32, i32) {
    %c0_i32 = arith.constant 0 : i32
    %c0_i32_0 = arith.constant 0 : i32
    %c0_i32_1 = arith.constant 0 : i32
    %c0_i32_2 = arith.constant 0 : i32
    return %c0_i32, %c0_i32_0, %c0_i32_1 : i32, i32, i32
  }
  func.func @transform_3(%arg0: i32) -> (i32, i32) {
    %c0_i32 = arith.constant 0 : i32
    %c0_i32_0 = arith.constant 0 : i32
    %c0_i32_1 = arith.constant 0 : i32
    return %c0_i32, %c0_i32_0 : i32, i32
  }
  func.func @transform_4(%arg0: i32) -> (i32, i32) {
    %c0_i32 = arith.constant 0 : i32
    %c0_i32_0 = arith.constant 0 : i32
    return %arg0, %c0_i32 : i32, i32
  }
}

</mosaic_0001>

<llo_original>
// kernel: tpu_custom_call.1
$region0: #{tpu_custom_call.1}
  #allocation0 [shape = 'u32[]', space=smem, size = 0x4, offset = 0x4, fixed_abs, tag = 'smem constant byte address 0x4 - core index']
  #allocation1 [shape = 'u32[72,128]{1,0:T(1,128)}', space=vmem, size = 0x9000, scoped, tag = 'internal scratch']
  %s0 = inlined_call_operand.hbm [shape: f32[64,128], index: 0, kind: input, shape index: {}]
  %s1 = inlined_call_operand.hbm [shape: f32[4,128,128], index: 1, kind: input, shape index: {}]
  %s2 = inlined_call_operand.hbm [shape: f32[4,1,128], index: 2, kind: input, shape index: {}]
  %s3 = inlined_call_operand.hbm [shape: f32[128,128], index: 3, kind: input, shape index: {}]
  %s4 = inlined_call_operand.hbm [shape: f32[64,128], index: 4, kind: output, shape index: {}]
  %s5 = sld [smem:[#allocation0]]
  $region65: #{tpu_custom_call.1} parent=0
    _
  %s7 = ssub.s32 1, %s5
  %s8 = scalar_select 0, %s7, %s5
  $region1: #{tpu_custom_call.1} parent=0
    #allocation2 [shape = 'u8[32768]{0}', space=vmem, size = 0x8000, scoped, tag = 'input window, operand 0']
    #allocation3 [shape = 's32[2]{0}', space=sflag, size = 0x8, scoped, tag = 'scoped memory for tpu_custom_call.1']
    #allocation4 [shape = 's32[2]{0}', space=sflag, size = 0x8, scoped, tag = 'scoped memory for tpu_custom_call.1']
    #allocation5 [shape = 'u8[262144]{0}', space=vmem, size = 0x40000, scoped, tag = 'input window, operand 1, single buffered']
    #allocation6 [shape = 's32[1]{0}', space=sflag, size = 0x4, scoped, tag = 'scoped memory for tpu_custom_call.1']
    #allocation7 [shape = 'u8[2048]{0}', space=vmem, size = 0x800, scoped, tag = 'input window, operand 2, single buffered']
    #allocation8 [shape = 'u8[65536]{0}', space=vmem, size = 0x10000, scoped, tag = 'input window, operand 3, single buffered']
    #allocation9 [shape = 's32[1]{0}', space=sflag, size = 0x4, scoped, tag = 'scoped memory for tpu_custom_call.1']
    #allocation10 [shape = 'u8[32768]{0}', space=vmem, size = 0x8000, scoped, tag = 'output window, operand 0']
    %9 = vsyncpa [#allocation3], 0
    %s10 = scalar_lea.sflag [#allocation3], 1
    %11 = vsyncpa %s10, 0
    %12 = vsyncpa [#allocation6], 0
    %13 = vsyncpa [#allocation9], 0
    %14 = vsyncpa [#allocation4], 0
    %s15 = scalar_lea.sflag [#allocation4], 1
    %16 = vsyncpa %s15, 0
    loop: start=0, step=1, limit=4
    $region2: #{tpu_custom_call.1} parent=1 // loop_pre_header
      _
    $region3: #{tpu_custom_call.1} parent=1 // loop_header
      %s18 = sphi 0, %s22
      %p19 = scmp.ge.s32.totalorder %s18, 4
      %s28 = sphi 0, %s30
      %s31 = sphi 0, %s28
      %s32 = sphi 0, %s31
      %s48 = sphi 0, %s32
      %s52 = sphi 0, %s52
      %s54 = sphi 0, %s52
      %s55 = sphi 0, %s54
      %s69 = sphi 0, %s55
      %s73 = sphi 0, %s73
      %s75 = sphi 0, %s73
      %s76 = sphi 0, %s75
      %s90 = sphi 0, %s76
      %s94 = sphi 0, %s94
      %s96 = sphi 0, %s94
      %s97 = sphi 0, %s96
      %s111 = sphi 0, %s97
      %s117 = sphi 0, %s119
      %s120 = sphi 0, %s117
      %s121 = sphi 0, %s120
      %s137 = sphi 0, %s121
    $region4: #{tpu_custom_call.1} parent=1 // loop_header_branch
      %21 = sbr.rel (%p19) target = $region8
    $region5: #{tpu_custom_call.1} parent=1 // loop_body
      %s23 = ssub.s32 %s18, 1
      %s24 = ssub.s32 %s18, 2
      %s25 = sadd.s32 %s18, 1
      %s26 = ssub.s32 %s18, %s25
      %p27 = scmp.eq.s32.totalorder %s26, 0
      %s29 = sadd.s32 %s28, 1
      %s30 = scalar_select %p27, %s28, %s29
      %p33 = pneg %p27
      %p34 = scmp.eq.s32.totalorder %s18, 1
      %p35 = por %p33, %p34
      %p36 = scmp.ne.s32.totalorder %s28, %s31
      %p37 = scmp.eq.s32.totalorder %s18, 0
      %p38 = por %p36, %p37
      %p39 = scmp.ne.s32.totalorder %s28, %s31
      %p40 = scmp.eq.s32.totalorder %s23, 1
      %p41 = por %p39, %p40
      %p42 = scmp.ne.s32.totalorder %s31, %s32
      %p43 = scmp.eq.s32.totalorder %s23, 0
      %p44 = por %p42, %p43
      %p45 = scmp.ne.s32.totalorder %s31, %s32
      %p46 = scmp.eq.s32.totalorder %s24, 1
      %p47 = por %p45, %p46
      %p49 = scmp.ne.s32.totalorder %s32, %s48
      %p50 = scmp.eq.s32.totalorder %s24, 0
      %p51 = por %p49, %p50
      %s53 = sadd.s32 %s52, 1
      %p56 = scmp.eq.s32.totalorder %s18, 1
      %p57 = scmp.ne.s32.totalorder %s52, %s54
      %p58 = scmp.eq.s32.totalorder %s18, 0
      %p59 = por %p57, %p58
      %p60 = scmp.ne.s32.totalorder %s52, %s54
      %p61 = scmp.eq.s32.totalorder %s23, 1
      %p62 = por %p60, %p61
      %p63 = scmp.ne.s32.totalorder %s54, %s55
      %p64 = scmp.eq.s32.totalorder %s23, 0
      %p65 = por %p63, %p64
      %p66 = scmp.ne.s32.totalorder %s54, %s55
      %p67 = scmp.eq.s32.totalorder %s24, 1
      %p68 = por %p66, %p67
      %p70 = scmp.ne.s32.totalorder %s55, %s69
      %p71 = scmp.eq.s32.totalorder %s24, 0
      %p72 = por %p70, %p71
      %s74 = sadd.s32 %s73, 1
      %p77 = scmp.eq.s32.totalorder %s18, 1
      %p78 = scmp.ne.s32.totalorder %s73, %s75
      %p79 = scmp.eq.s32.totalorder %s18, 0
      %p80 = por %p78, %p79
      %p81 = scmp.ne.s32.totalorder %s73, %s75
      %p82 = scmp.eq.s32.totalorder %s23, 1
      %p83 = por %p81, %p82
      %p84 = scmp.ne.s32.totalorder %s75, %s76
      %p85 = scmp.eq.s32.totalorder %s23, 0
      %p86 = por %p84, %p85
      %p87 = scmp.ne.s32.totalorder %s75, %s76
      %p88 = scmp.eq.s32.totalorder %s24, 1
      %p89 = por %p87, %p88
      %p91 = scmp.ne.s32.totalorder %s76, %s90
      %p92 = scmp.eq.s32.totalorder %s24, 0
      %p93 = por %p91, %p92
      %s95 = sadd.s32 %s94, 1
      %p98 = scmp.eq.s32.totalorder %s18, 1
      %p99 = scmp.ne.s32.totalorder %s94, %s96
      %p100 = scmp.eq.s32.totalorder %s18, 0
      %p101 = por %p99, %p100
      %p102 = scmp.ne.s32.totalorder %s94, %s96
      %p103 = scmp.eq.s32.totalorder %s23, 1
      %p104 = por %p102, %p103
      %p105 = scmp.ne.s32.totalorder %s96, %s97
      %p106 = scmp.eq.s32.totalorder %s23, 0
      %p107 = por %p105, %p106
      %p108 = scmp.ne.s32.totalorder %s96, %s97
      %p109 = scmp.eq.s32.totalorder %s24, 1
      %p110 = por %p108, %p109
      %p112 = scmp.ne.s32.totalorder %s97, %s111
      %p113 = scmp.eq.s32.totalorder %s24, 0
      %p114 = por %p112, %p113
      %s115 = ssub.s32 %s18, %s25
      %p116 = scmp.eq.s32.totalorder %s115, 0
      %s118 = sadd.s32 %s117, 1
      %s119 = scalar_select %p116, %s117, %s118
      %p122 = pneg %p116
      %p123 = scmp.eq.s32.totalorder %s18, 1
      %p124 = por %p122, %p123
      %p125 = scmp.ne.s32.totalorder %s117, %s120
      %p126 = scmp.eq.s32.totalorder %s18, 0
      %p127 = por %p125, %p126
      %p128 = scmp.ne.s32.totalorder %s117, %s120
      %p129 = scmp.eq.s32.totalorder %s23, 1
      %p130 = por %p128, %p129
      %p131 = scmp.ne.s32.totalorder %s120, %s121
      %p132 = scmp.eq.s32.totalorder %s23, 0
      %p133 = por %p131, %p132
      %p134 = scmp.ne.s32.totalorder %s120, %s121
      %p135 = scmp.eq.s32.totalorder %s24, 1
      %p136 = por %p134, %p135
      %p138 = scmp.ne.s32.totalorder %s121, %s137
      %p139 = scmp.eq.s32.totalorder %s24, 0
      %p140 = por %p138, %p139
      %p141 = scmp.le.s32.totalorder 1, %s18
      %p142 = scmp.lt.s32.totalorder %s18, 3
      %p143 = pnand %p141, %p142
      %p144 = pneg %p143
      // Predicated region
      $region9: #{tpu_custom_call.1} parent=5 // pred_check
        _
      $region10: #{tpu_custom_call.1} parent=5 // pred_check_branch
        %146 = sbr.rel (%p143) target = $region12
      $region11: #{tpu_custom_call.1} parent=5 // pred_region
        %s147 = ssub.s32 %s18, 1
        // Predicated region
        $region13: #{tpu_custom_call.1} parent=11 // pred_check
          %p148 = pneg %p65
        $region14: #{tpu_custom_call.1} parent=11 // pred_check_branch
          %150 = sbr.rel (%p148) target = $region16
        $region15: #{tpu_custom_call.1} parent=11 // pred_region
          %152 = vsyncadd [#allocation6], 0
          %s153 = sshll.u32 %s1, 4
          %s154 = int_to_ptr.hbm [resolvable:$true] %s153
          %s155 = sshll.u32 [#allocation5], 4
          %s156 = int_to_ptr.vmem [resolvable:$true] %s155
          %161 = dma.hbm_to_vmem [thread:$0]  %s154, 8192, %s156, [#allocation6], 128, 128, 8
        $region16: #{tpu_custom_call.1} parent=11 // pred_fallthru
          _
        // Predicated region
        $region17: #{tpu_custom_call.1} parent=11 // pred_check
          %p162 = pneg %p86
        $region18: #{tpu_custom_call.1} parent=11 // pred_check_branch
          %164 = sbr.rel (%p162) target = $region20
        $region19: #{tpu_custom_call.1} parent=11 // pred_region
          %166 = vsyncadd [#allocation6], 0
          %s167 = sshll.u32 %s2, 4
          %s168 = int_to_ptr.hbm [resolvable:$true] %s167
          %s169 = sshll.u32 [#allocation7], 4
          %s170 = int_to_ptr.vmem [resolvable:$true] %s169
          %175 = dma.hbm_to_vmem [thread:$0]  %s168, 64, %s170, [#allocation6], 16, 16, 1
        $region20: #{tpu_custom_call.1} parent=11 // pred_fallthru
          _
        // Predicated region
        $region21: #{tpu_custom_call.1} parent=11 // pred_check
          %p176 = pneg %p107
        $region22: #{tpu_custom_call.1} parent=11 // pred_check_branch
          %178 = sbr.rel (%p176) target = $region24
        $region23: #{tpu_custom_call.1} parent=11 // pred_region
          %180 = vsyncadd [#allocation9], 0
          %s181 = sshll.u32 %s3, 4
          %s182 = int_to_ptr.hbm [resolvable:$true] %s181
          %s183 = sshll.u32 [#allocation8], 4
          %s184 = int_to_ptr.vmem [resolvable:$true] %s183
          %189 = dma.hbm_to_vmem [thread:$0]  %s182, 2048, %s184, [#allocation9], 128, 128, 8
        $region24: #{tpu_custom_call.1} parent=11 // pred_fallthru
          _
      $region12: #{tpu_custom_call.1} parent=5 // pred_fallthru
        _
      %p190 = scmp.lt.s32.totalorder %s18, 2
      // Predicated region
      $region25: #{tpu_custom_call.1} parent=5 // pred_check
        %p191 = pneg %p190
      $region26: #{tpu_custom_call.1} parent=5 // pred_check_branch
        %193 = sbr.rel (%p191) target = $region28
      $region27: #{tpu_custom_call.1} parent=5 // pred_region
        // Predicated region
        $region29: #{tpu_custom_call.1} parent=27 // pred_check
          %p194 = pneg %p38
        $region30: #{tpu_custom_call.1} parent=27 // pred_check_branch
          %196 = sbr.rel (%p194) target = $region32
        $region31: #{tpu_custom_call.1} parent=27 // pred_region
          %s197 = sand.u32 %s28, 1
          %s198 = scalar_lea.sflag [#allocation3], %s197
          %s199 = sand.u32 %s28, 1
          %s200 = smul.addr %s199, 32
          %s201 = scalar_lea.vmem [#allocation2], %s200
          %s202 = smul.u32 4, %s18
          %204 = vsyncadd %s198, 0
          %s205 = smul.addr %s202, 8
          %s206 = scalar_lea.hbm %s0, %s205
          %s207 = sshll.u32 %s206, 4
          %s208 = int_to_ptr.hbm [resolvable:$true] %s207
          %s209 = sshll.u32 %s201, 4
          %s210 = int_to_ptr.vmem [resolvable:$true] %s209
          %215 = dma.hbm_to_vmem [thread:$0]  %s208, 512, %s210, %s198, 128, 128, 8
        $region32: #{tpu_custom_call.1} parent=27 // pred_fallthru
          _
      $region28: #{tpu_custom_call.1} parent=5 // pred_fallthru
        _
      %p216 = scmp.le.s32.totalorder 1, %s18
      %p217 = scmp.lt.s32.totalorder %s18, 3
      %p218 = pnand %p216, %p217
      %p219 = pneg %p218
      // Predicated region
      $region33: #{tpu_custom_call.1} parent=5 // pred_check
        _
      $region34: #{tpu_custom_call.1} parent=5 // pred_check_branch
        %221 = sbr.rel (%p218) target = $region36
      $region35: #{tpu_custom_call.1} parent=5 // pred_region
        %s222 = ssub.s32 %s18, 1
        %s223 = sand.u32 %s31, 1
        %s224 = scalar_lea.sflag [#allocation3], %s223
        %s225 = sand.u32 %s31, 1
        %s226 = smul.addr %s225, 32
        %s227 = scalar_lea.vmem [#allocation2], %s226
        // Predicated region
        $region37: #{tpu_custom_call.1} parent=35 // pred_check
          %p228 = pneg %p44
        $region38: #{tpu_custom_call.1} parent=35 // pred_check_branch
          %230 = sbr.rel (%p228) target = $region40
        $region39: #{tpu_custom_call.1} parent=35 // pred_region
          %232 = dma.done %s224, 512
        $region40: #{tpu_custom_call.1} parent=35 // pred_fallthru
          _
        // Predicated region
        $region41: #{tpu_custom_call.1} parent=35 // pred_check
          %p233 = pneg %p65
        $region42: #{tpu_custom_call.1} parent=35 // pred_check_branch
          %235 = sbr.rel (%p233) target = $region44
        $region43: #{tpu_custom_call.1} parent=35 // pred_region
          %237 = dma.done [#allocation6], 8192
        $region44: #{tpu_custom_call.1} parent=35 // pred_fallthru
          _
        // Predicated region
        $region45: #{tpu_custom_call.1} parent=35 // pred_check
          %p238 = pneg %p86
        $region46: #{tpu_custom_call.1} parent=35 // pred_check_branch
          %240 = sbr.rel (%p238) target = $region48
        $region47: #{tpu_custom_call.1} parent=35 // pred_region
          %242 = dma.done [#allocation6], 64
        $region48: #{tpu_custom_call.1} parent=35 // pred_fallthru
          _
        // Predicated region
        $region49: #{tpu_custom_call.1} parent=35 // pred_check
          %p243 = pneg %p107
        $region50: #{tpu_custom_call.1} parent=35 // pred_check_branch
          %245 = sbr.rel (%p243) target = $region52
        $region51: #{tpu_custom_call.1} parent=35 // pred_region
          %247 = dma.done [#allocation9], 2048
        $region52: #{tpu_custom_call.1} parent=35 // pred_fallthru
          _
        %s248 = sand.u32 %s31, 1
        %s249 = scalar_lea.sflag [#allocation3], %s248
        %s250 = sand.u32 %s31, 1
        %s251 = smul.addr %s250, 32
        %s252 = scalar_lea.vmem [#allocation2], %s251
        %p253 = pneg %p44
        %p254 = pneg %p41
        %p255 = pneg %p65
        %p256 = pneg %p62
        %p257 = pneg %p86
        %p258 = pneg %p83
        %p259 = pneg %p107
        %p260 = pneg %p104
        %p261 = pneg %p133
        %p262 = pneg %p130
        %s263 = sand.u32 %s120, 1
        %s264 = scalar_lea.sflag [#allocation4], %s263
        %s265 = sand.u32 %s120, 1
        %s266 = smul.addr %s265, 32
        %s267 = scalar_lea.vmem [#allocation10], %s266
        %s268 = smul.u32 4, %s23
        %s269 = smul.u32 4, %s23
        %v270 = vld [vmem:[%s227] sm:$0xff]
        %v271 = vld [vmem:[%s227 + $0x8] sm:$0xff]
        %v272 = vld [vmem:[%s227 + $0x10] sm:$0xff]
        %v273 = vld [vmem:[%s227 + $0x18] sm:$0xff]
        %v274 = vld [vmem:[#allocation5] sm:$0xff]
        %v275 = vld [vmem:[#allocation5 + $0x8] sm:$0xff]
        %v276 = vld [vmem:[#allocation5 + $0x10] sm:$0xff]
        %v277 = vld [vmem:[#allocation5 + $0x18] sm:$0xff]
        %v278 = vld [vmem:[#allocation5 + $0x20] sm:$0xff]
        %v279 = vld [vmem:[#allocation5 + $0x28] sm:$0xff]
        %v280 = vld [vmem:[#allocation5 + $0x30] sm:$0xff]
        %v281 = vld [vmem:[#allocation5 + $0x38] sm:$0xff]
        %v282 = vld [vmem:[#allocation5 + $0x40] sm:$0xff]
        %v283 = vld [vmem:[#allocation5 + $0x48] sm:$0xff]
        %v284 = vld [vmem:[#allocation5 + $0x50] sm:$0xff]
        %v285 = vld [vmem:[#allocation5 + $0x58] sm:$0xff]
        %v286 = vld [vmem:[#allocation5 + $0x60] sm:$0xff]
        %v287 = vld [vmem:[#allocation5 + $0x68] sm:$0xff]
        %v288 = vld [vmem:[#allocation5 + $0x70] sm:$0xff]
        %v289 = vld [vmem:[#allocation5 + $0x78] sm:$0xff]
        %v290 = vld [vmem:[#allocation7] sm:$0x1]
        %v292 = vperm.slane %v290, 0
        %294 = vmatpush.msra.mxu0 %v289
        %295 = vmatpush.msra.mxu0 %v288
        %296 = vmatpush.msra.mxu0 %v287
        %297 = vmatpush.msra.mxu0 %v286
        %298 = vmatpush.msra.mxu0 %v285
        %299 = vmatpush.msra.mxu0 %v284
        %300 = vmatpush.msra.mxu0 %v283
        %301 = vmatpush.msra.mxu0 %v282
        %302 = vmatpush.msra.mxu0 %v281
        %303 = vmatpush.msra.mxu0 %v280
        %304 = vmatpush.msra.mxu0 %v279
        %305 = vmatpush.msra.mxu0 %v278
        %306 = vmatpush.msra.mxu0 %v277
        %307 = vmatpush.msra.mxu0 %v276
        %308 = vmatpush.msra.mxu0 %v275
        %309 = vmatpush.msra.mxu0 %v274
        %310 = vmatmul.f32.gmra.mxu0 %v270
        %v311 = vpop.f32.mrf.mxu0
        %v312 = vadd.f32 %v292, %v311
        %313 = vmatmul.f32.gmra.mxu0 %v271
        %v314 = vpop.f32.mrf.mxu0
        %v315 = vadd.f32 %v292, %v314
        %316 = vmatmul.f32.gmra.mxu0 %v272
        %v317 = vpop.f32.mrf.mxu0
        %v318 = vadd.f32 %v292, %v317
        %319 = vmatmul.f32.gmra.mxu0 %v273
        %v320 = vpop.f32.mrf.mxu0
        %v321 = vadd.f32 %v292, %v320
        %322 = vdwg.mxu0
        %v323 = vmax.f32 %v312, 0.0
        %v324 = vmax.f32 %v315, 0.0
        %v325 = vmax.f32 %v318, 0.0
        %v326 = vmax.f32 %v321, 0.0
        %s327 = scalar_lea.vmem [#allocation5], 128
        %v328 = vld [vmem:[%s327] sm:$0xff]
        %v329 = vld [vmem:[%s327 + $0x8] sm:$0xff]
        %v330 = vld [vmem:[%s327 + $0x10] sm:$0xff]
        %v331 = vld [vmem:[%s327 + $0x18] sm:$0xff]
        %v332 = vld [vmem:[%s327 + $0x20] sm:$0xff]
        %v333 = vld [vmem:[%s327 + $0x28] sm:$0xff]
        %v334 = vld [vmem:[%s327 + $0x30] sm:$0xff]
        %v335 = vld [vmem:[%s327 + $0x38] sm:$0xff]
        %v336 = vld [vmem:[%s327 + $0x40] sm:$0xff]
        %v337 = vld [vmem:[%s327 + $0x48] sm:$0xff]
        %v338 = vld [vmem:[%s327 + $0x50] sm:$0xff]
        %v339 = vld [vmem:[%s327 + $0x58] sm:$0xff]
        %v340 = vld [vmem:[%s327 + $0x60] sm:$0xff]
        %v341 = vld [vmem:[%s327 + $0x68] sm:$0xff]
        %v342 = vld [vmem:[%s327 + $0x70] sm:$0xff]
        %v343 = vld [vmem:[%s327 + $0x78] sm:$0xff]
        %s344 = scalar_lea.vmem [#allocation7], 1
        %v345 = vld [vmem:[%s344] sm:$0x1]
        %v347 = vperm.slane %v345, 0
        %349 = vmatpush.msra.mxu0 %v343
        %350 = vmatpush.msra.mxu0 %v342
        %351 = vmatpush.msra.mxu0 %v341
        %352 = vmatpush.msra.mxu0 %v340
        %353 = vmatpush.msra.mxu0 %v339
        %354 = vmatpush.msra.mxu0 %v338
        %355 = vmatpush.msra.mxu0 %v337
        %356 = vmatpush.msra.mxu0 %v336
        %357 = vmatpush.msra.mxu0 %v335
        %358 = vmatpush.msra.mxu0 %v334
        %359 = vmatpush.msra.mxu0 %v333
        %360 = vmatpush.msra.mxu0 %v332
        %361 = vmatpush.msra.mxu0 %v331
        %362 = vmatpush.msra.mxu0 %v330
        %363 = vmatpush.msra.mxu0 %v329
        %364 = vmatpush.msra.mxu0 %v328
        %365 = vmatmul.f32.gmra.mxu0 %v323
        %v366 = vpop.f32.mrf.mxu0
        %v367 = vadd.f32 %v347, %v366
        %368 = vmatmul.f32.gmra.mxu0 %v324
        %v369 = vpop.f32.mrf.mxu0
        %v370 = vadd.f32 %v347, %v369
        %371 = vmatmul.f32.gmra.mxu0 %v325
        %v372 = vpop.f32.mrf.mxu0
        %v373 = vadd.f32 %v347, %v372
        %374 = vmatmul.f32.gmra.mxu0 %v326
        %v375 = vpop.f32.mrf.mxu0
        %v376 = vadd.f32 %v347, %v375
        %377 = vdwg.mxu0
        %v378 = vmax.f32 %v367, 0.0
        %v379 = vmax.f32 %v370, 0.0
        %v380 = vmax.f32 %v373, 0.0
        %v381 = vmax.f32 %v376, 0.0
        %s382 = scalar_lea.vmem [#allocation5], 256
        %v383 = vld [vmem:[%s382] sm:$0xff]
        %v384 = vld [vmem:[%s382 + $0x8] sm:$0xff]
        %v385 = vld [vmem:[%s382 + $0x10] sm:$0xff]
        %v386 = vld [vmem:[%s382 + $0x18] sm:$0xff]
        %v387 = vld [vmem:[%s382 + $0x20] sm:$0xff]
        %v388 = vld [vmem:[%s382 + $0x28] sm:$0xff]
        %v389 = vld [vmem:[%s382 + $0x30] sm:$0xff]
        %v390 = vld [vmem:[%s382 + $0x38] sm:$0xff]
        %v391 = vld [vmem:[%s382 + $0x40] sm:$0xff]
        %v392 = vld [vmem:[%s382 + $0x48] sm:$0xff]
        %v393 = vld [vmem:[%s382 + $0x50] sm:$0xff]
        %v394 = vld [vmem:[%s382 + $0x58] sm:$0xff]
        %v395 = vld [vmem:[%s382 + $0x60] sm:$0xff]
        %v396 = vld [vmem:[%s382 + $0x68] sm:$0xff]
        %v397 = vld [vmem:[%s382 + $0x70] sm:$0xff]
        %v398 = vld [vmem:[%s382 + $0x78] sm:$0xff]
        %s399 = scalar_lea.vmem [#allocation7], 2
        %v400 = vld [vmem:[%s399] sm:$0x1]
        %v402 = vperm.slane %v400, 0
        %404 = vmatpush.msra.mxu0 %v398
        %405 = vmatpush.msra.mxu0 %v397
        %406 = vmatpush.msra.mxu0 %v396
        %407 = vmatpush.msra.mxu0 %v395
        %408 = vmatpush.msra.mxu0 %v394
        %409 = vmatpush.msra.mxu0 %v393
        %410 = vmatpush.msra.mxu0 %v392
        %411 = vmatpush.msra.mxu0 %v391
        %412 = vmatpush.msra.mxu0 %v390
        %413 = vmatpush.msra.mxu0 %v389
        %414 = vmatpush.msra.mxu0 %v388
        %415 = vmatpush.msra.mxu0 %v387
        %416 = vmatpush.msra.mxu0 %v386
        %417 = vmatpush.msra.mxu0 %v385
        %418 = vmatpush.msra.mxu0 %v384
        %419 = vmatpush.msra.mxu0 %v383
        %420 = vmatmul.f32.gmra.mxu0 %v378
        %v421 = vpop.f32.mrf.mxu0
        %v422 = vadd.f32 %v402, %v421
        %423 = vmatmul.f32.gmra.mxu0 %v379
        %v424 = vpop.f32.mrf.mxu0
        %v425 = vadd.f32 %v402, %v424
        %426 = vmatmul.f32.gmra.mxu0 %v380
        %v427 = vpop.f32.mrf.mxu0
        %v428 = vadd.f32 %v402, %v427
        %429 = vmatmul.f32.gmra.mxu0 %v381
        %v430 = vpop.f32.mrf.mxu0
        %v431 = vadd.f32 %v402, %v430
        %432 = vdwg.mxu0
        %v433 = vmax.f32 %v422, 0.0
        %v434 = vmax.f32 %v425, 0.0
        %v435 = vmax.f32 %v428, 0.0
        %v436 = vmax.f32 %v431, 0.0
        %s437 = scalar_lea.vmem [#allocation5], 384
        %v438 = vld [vmem:[%s437] sm:$0xff]
        %v439 = vld [vmem:[%s437 + $0x8] sm:$0xff]
        %v440 = vld [vmem:[%s437 + $0x10] sm:$0xff]
        %v441 = vld [vmem:[%s437 + $0x18] sm:$0xff]
        %v442 = vld [vmem:[%s437 + $0x20] sm:$0xff]
        %v443 = vld [vmem:[%s437 + $0x28] sm:$0xff]
        %v444 = vld [vmem:[%s437 + $0x30] sm:$0xff]
        %v445 = vld [vmem:[%s437 + $0x38] sm:$0xff]
        %v446 = vld [vmem:[%s437 + $0x40] sm:$0xff]
        %v447 = vld [vmem:[%s437 + $0x48] sm:$0xff]
        %v448 = vld [vmem:[%s437 + $0x50] sm:$0xff]
        %v449 = vld [vmem:[%s437 + $0x58] sm:$0xff]
        %v450 = vld [vmem:[%s437 + $0x60] sm:$0xff]
        %v451 = vld [vmem:[%s437 + $0x68] sm:$0xff]
        %v452 = vld [vmem:[%s437 + $0x70] sm:$0xff]
        %v453 = vld [vmem:[%s437 + $0x78] sm:$0xff]
        %s454 = scalar_lea.vmem [#allocation7], 3
        %v455 = vld [vmem:[%s454] sm:$0x1]
        %v457 = vperm.slane %v455, 0
        %459 = vmatpush.msra.mxu0 %v453
        %460 = vmatpush.msra.mxu0 %v452
        %461 = vmatpush.msra.mxu0 %v451
        %462 = vmatpush.msra.mxu0 %v450
        %463 = vmatpush.msra.mxu0 %v449
        %464 = vmatpush.msra.mxu0 %v448
        %465 = vmatpush.msra.mxu0 %v447
        %466 = vmatpush.msra.mxu0 %v446
        %467 = vmatpush.msra.mxu0 %v445
        %468 = vmatpush.msra.mxu0 %v444
        %469 = vmatpush.msra.mxu0 %v443
        %470 = vmatpush.msra.mxu0 %v442
        %471 = vmatpush.msra.mxu0 %v441
        %472 = vmatpush.msra.mxu0 %v440
        %473 = vmatpush.msra.mxu0 %v439
        %474 = vmatpush.msra.mxu0 %v438
        %475 = vmatmul.f32.gmra.mxu0 %v433
        %v476 = vpop.f32.mrf.mxu0
        %v477 = vadd.f32 %v457, %v476
        %478 = vmatmul.f32.gmra.mxu0 %v434
        %v479 = vpop.f32.mrf.mxu0
        %v480 = vadd.f32 %v457, %v479
        %481 = vmatmul.f32.gmra.mxu0 %v435
        %v482 = vpop.f32.mrf.mxu0
        %v483 = vadd.f32 %v457, %v482
        %484 = vmatmul.f32.gmra.mxu0 %v436
        %v485 = vpop.f32.mrf.mxu0
        %v486 = vadd.f32 %v457, %v485
        %487 = vdwg.mxu0
        %v488 = vadd.f32 %v270, %v477
        %v489 = vadd.f32 %v271, %v480
        %v490 = vadd.f32 %v272, %v483
        %v491 = vadd.f32 %v273, %v486
        %v492 = vld [vmem:[#allocation8] sm:$0xff]
        %v493 = vld [vmem:[#allocation8 + $0x8] sm:$0xff]
        %v494 = vld [vmem:[#allocation8 + $0x10] sm:$0xff]
        %v495 = vld [vmem:[#allocation8 + $0x18] sm:$0xff]
        %v496 = vld [vmem:[#allocation8 + $0x20] sm:$0xff]
        %v497 = vld [vmem:[#allocation8 + $0x28] sm:$0xff]
        %v498 = vld [vmem:[#allocation8 + $0x30] sm:$0xff]
        %v499 = vld [vmem:[#allocation8 + $0x38] sm:$0xff]
        %v500 = vld [vmem:[#allocation8 + $0x40] sm:$0xff]
        %v501 = vld [vmem:[#allocation8 + $0x48] sm:$0xff]
        %v502 = vld [vmem:[#allocation8 + $0x50] sm:$0xff]
        %v503 = vld [vmem:[#allocation8 + $0x58] sm:$0xff]
        %v504 = vld [vmem:[#allocation8 + $0x60] sm:$0xff]
        %v505 = vld [vmem:[#allocation8 + $0x68] sm:$0xff]
        %v506 = vld [vmem:[#allocation8 + $0x70] sm:$0xff]
        %v507 = vld [vmem:[#allocation8 + $0x78] sm:$0xff]
        %508 = vmatpush.msra.mxu0 %v507
        %509 = vmatpush.msra.mxu0 %v506
        %510 = vmatpush.msra.mxu0 %v505
        %511 = vmatpush.msra.mxu0 %v504
        %512 = vmatpush.msra.mxu0 %v503
        %513 = vmatpush.msra.mxu0 %v502
        %514 = vmatpush.msra.mxu0 %v501
        %515 = vmatpush.msra.mxu0 %v500
        %516 = vmatpush.msra.mxu0 %v499
        %517 = vmatpush.msra.mxu0 %v498
        %518 = vmatpush.msra.mxu0 %v497
        %519 = vmatpush.msra.mxu0 %v496
        %520 = vmatpush.msra.mxu0 %v495
        %521 = vmatpush.msra.mxu0 %v494
        %522 = vmatpush.msra.mxu0 %v493
        %523 = vmatpush.msra.mxu0 %v492
        %524 = vmatmul.f32.gmra.mxu0 %v488
        %v525 = vpop.f32.mrf.mxu0
        %v526 = vadd.f32 0.0, %v525
        %527 = vmatmul.f32.gmra.mxu0 %v489
        %v528 = vpop.f32.mrf.mxu0
        %v529 = vadd.f32 0.0, %v528
        %530 = vmatmul.f32.gmra.mxu0 %v490
        %v531 = vpop.f32.mrf.mxu0
        %v532 = vadd.f32 0.0, %v531
        %533 = vmatmul.f32.gmra.mxu0 %v491
        %v534 = vpop.f32.mrf.mxu0
        %v535 = vadd.f32 0.0, %v534
        %536 = vdwg.mxu0
        %v537 = vrcp.pop %v526
        %v538 = vrcp.pop %v529
        %v539 = vrcp.pop %v532
        %v540 = vrcp.pop %v535
        %v541 = vmul.f32 %v526, %v537
        %v542 = vmul.f32 %v529, %v538
        %v543 = vmul.f32 %v532, %v539
        %v544 = vmul.f32 %v535, %v540
        %v545 = vsub.f32 2.0, %v541
        %v546 = vsub.f32 2.0, %v542
        %v547 = vsub.f32 2.0, %v543
        %v548 = vsub.f32 2.0, %v544
        %v549 = vmul.f32 %v537, %v545
        %v550 = vmul.f32 %v538, %v546
        %v551 = vmul.f32 %v539, %v547
        %v552 = vmul.f32 %v540, %v548
        %v553 = vmul.f32 %v488, %v549
        %v554 = vmul.f32 %v489, %v550
        %v555 = vmul.f32 %v490, %v551
        %v556 = vmul.f32 %v491, %v552
        %557 = vst [vmem:[%s267] sm:$0xff] %v553
        %558 = vst [vmem:[%s267 + $0x8] sm:$0xff] %v554
        %559 = vst [vmem:[%s267 + $0x10] sm:$0xff] %v555
        %560 = vst [vmem:[%s267 + $0x18] sm:$0xff] %v556
        %s561 = sand.u32 %s120, 1
        %s562 = scalar_lea.sflag [#allocation4], %s561
        %s563 = sand.u32 %s120, 1
        %s564 = smul.addr %s563, 32
        %s565 = scalar_lea.vmem [#allocation10], %s564
        // Predicated region
        $region53: #{tpu_custom_call.1} parent=35 // pred_check
          %p566 = pneg %p130
        $region54: #{tpu_custom_call.1} parent=35 // pred_check_branch
          %568 = sbr.rel (%p566) target = $region56
        $region55: #{tpu_custom_call.1} parent=35 // pred_region
          %s569 = smul.u32 4, %s23
          %571 = vsyncadd %s562, 0
          %s572 = smul.addr %s569, 8
          %s573 = scalar_lea.hbm %s4, %s572
          %s574 = sshll.u32 %s565, 4
          %s575 = int_to_ptr.vmem [resolvable:$true] %s574
          %s576 = sshll.u32 %s573, 4
          %s577 = int_to_ptr.hbm [resolvable:$true] %s576
          %582 = dma.vmem_to_hbm [thread:$0]  %s575, 512, %s577, %s562, 128, 128, 8
        $region56: #{tpu_custom_call.1} parent=35 // pred_fallthru
          _
      $region36: #{tpu_custom_call.1} parent=5 // pred_fallthru
        _
      %p583 = scmp.le.s32.totalorder 2, %s18
      // Predicated region
      $region57: #{tpu_custom_call.1} parent=5 // pred_check
        %p584 = pneg %p583
      $region58: #{tpu_custom_call.1} parent=5 // pred_check_branch
        %586 = sbr.rel (%p584) target = $region60
      $region59: #{tpu_custom_call.1} parent=5 // pred_region
        %s587 = ssub.s32 %s18, 2
        // Predicated region
        $region61: #{tpu_custom_call.1} parent=59 // pred_check
          %p588 = pneg %p136
        $region62: #{tpu_custom_call.1} parent=59 // pred_check_branch
          %590 = sbr.rel (%p588) target = $region64
        $region63: #{tpu_custom_call.1} parent=59 // pred_region
          %s591 = sand.u32 %s121, 1
          %s592 = scalar_lea.sflag [#allocation4], %s591
          %s593 = sand.u32 %s121, 1
          %s594 = smul.addr %s593, 32
          %s595 = scalar_lea.vmem [#allocation10], %s594
          %597 = dma.done %s592, 512
        $region64: #{tpu_custom_call.1} parent=59 // pred_fallthru
          _
      $region60: #{tpu_custom_call.1} parent=5 // pred_fallthru
        _
    $region6: #{tpu_custom_call.1} parent=1 // loop_footer
      %s22 = sadd.s32 1, %s18
    $region7: #{tpu_custom_call.1} parent=1 // loop_footer_branch
      %17 = sbr.rel target = $region3
    $region8: #{tpu_custom_call.1} parent=1 // loop_exit
      _
    %598 = vsyncpa [#allocation3], 1
    %s599 = scalar_lea.sflag [#allocation3], 1
    %600 = vsyncpa %s599, 1
    %601 = vsyncpa [#allocation6], 1
    %602 = vsyncpa [#allocation9], 1
    %603 = vsyncpa [#allocation4], 1
    %s604 = scalar_lea.sflag [#allocation4], 1
    %605 = vsyncpa %s604, 1

</llo_original>
